<compile_context>
chip_gen: v7x
topology: tpu7x:2x2x1
jax: 0.10.0
libtpu: 0.0.40
codegen_flags: <defaults>
</compile_context>

<pallas_src>
import math

import jax
import jax.numpy as jnp
import numpy as np
from jax.experimental import pallas as pl
from jax.experimental.pallas import tpu as pltpu


def _round_up(v: int, m: int) -> int:
    return ((v + m - 1) // m) * m


def _cdiv(a: int, b: int) -> int:
    return -(-a // b)


# ----------------------------------------------------------------------------
# Kernel bodies.
# ----------------------------------------------------------------------------
def _fgd_kernel_fused(x_ref, mask_ref, a_ref, s_ref, filt_ref, nonstat_ref):
    """One M-tile; A/S/mask fully resident (single-buffered constants)."""
    x32 = x_ref[...]                                      # (bm, L) f32
    xc = x32.astype(a_ref.dtype)

    # Fused analysis DFT: spec = [Xr | Xi], f32 MXU accumulation.
    spec = jnp.dot(xc, a_ref[...], preferred_element_type=jnp.float32)
    # Top-k sigmoid frequency mask (f32, VPU).
    spec = spec * mask_ref[...]
    # Fused synthesis (irfft with n = seq_len).
    y = jnp.dot(spec.astype(s_ref.dtype), s_ref[...],
                preferred_element_type=jnp.float32)       # (bm, L) f32

    filt_ref[...] = y.astype(filt_ref.dtype)
    nonstat_ref[...] = (x32 - y).astype(nonstat_ref.dtype)


def _fgd_kernel_ktiled(x_ref, mask_ref, a_ref, s_ref, filt_ref, nonstat_ref,
                       acc_ref):
    """Frequency-axis tiled variant: A/S streamed, f32 accumulator scratch."""
    k = pl.program_id(1)

    @pl.when(k == 0)
    def _init():
        acc_ref[...] = jnp.zeros_like(acc_ref)

    x32 = x_ref[...]                                      # (bm, L) f32
    xc = x32.astype(a_ref.dtype)
    spec = jnp.dot(xc, a_ref[...], preferred_element_type=jnp.float32)
    spec = spec * mask_ref[...]
    acc_ref[...] += jnp.dot(spec.astype(s_ref.dtype), s_ref[...],
                            preferred_element_type=jnp.float32)

    @pl.when(k == pl.num_programs(1) - 1)
    def _finalize():
        y = acc_ref[...]
        filt_ref[...] = y.astype(filt_ref.dtype)
        nonstat_ref[...] = (x32 - y).astype(nonstat_ref.dtype)


# ----------------------------------------------------------------------------
# Fused real-DFT matrices matching jnp.fft.rfft / irfft(n=L); frequency axis
# zero-padded to Fp (padded columns/rows are zero => results unchanged).
# ----------------------------------------------------------------------------
def _build_fused_dft(seq_len: int, f_pad: int, dtype):
    L = seq_len
    F = L // 2 + 1
    t = np.arange(L, dtype=np.float64)
    f = np.arange(F, dtype=np.float64)
    ang = 2.0 * math.pi * np.outer(t, f) / L              # (L, F)

    ca = np.cos(ang)                                      # analysis real
    sa = -np.sin(ang)                                     # analysis imag

    w = np.full((F,), 2.0, dtype=np.float64)              # irfft weights
    w[0] = 1.0
    if L % 2 == 0:
        w[F - 1] = 1.0
    cs = (w[:, None] / L) * np.cos(ang.T)                 # (F, L)
    ss = -(w[:, None] / L) * np.sin(ang.T)                # (F, L)

    A = np.zeros((L, 2 * f_pad), dtype=np.float64)
    A[:, :F] = ca
    A[:, f_pad:f_pad + F] = sa

    S = np.zeros((2 * f_pad, L), dtype=np.float64)
    S[:F, :] = cs
    S[f_pad:f_pad + F, :] = ss

    return jnp.asarray(A, dtype), jnp.asarray(S, dtype)


# ----------------------------------------------------------------------------
# Wrapper: mask construction + layout glue + pallas_call.
# ----------------------------------------------------------------------------
def frequency_guided_decomposition(x, freq_weights, top_k, *,
                                   compute_dtype=jnp.bfloat16,
                                   block_m=256,
                                   filtered_dtype=None,
                                   force_num_k_tiles=None,
                                   force_streamed_mask=False):
    """x: (B, seq_len, n_var);  freq_weights: (1, n_var, seq_len//2+1)."""
    B, L, n_var = x.shape
    F = L // 2 + 1
    out_dtype = x.dtype
    filt_dtype = filtered_dtype if filtered_dtype is not None else out_dtype

    # --- glue: top-k sigmoid mask (parameter-only, independent of x) --------
    w = jax.nn.sigmoid(freq_weights.astype(jnp.float32))          # (1,n_var,F)
    topk_vals, topk_idx = jax.lax.top_k(w, top_k)                 # (1,n_var,k)
    onehot = jax.nn.one_hot(topk_idx, F, dtype=jnp.float32)       # (1,n_var,k,F)
    mask = jnp.sum(onehot * topk_vals[..., None], axis=-2)[0]     # (n_var, F)

    # --- geometry -------------------------------------------------------------
    M = B * n_var
    Fp = _round_up(F, 128)
    two_fp = 2 * Fp
    csize = np.dtype(compute_dtype).itemsize
    fsize = np.dtype(filt_dtype).itemsize

    # Channel-aligned tiles => a single constant (bm, 2Fp) mask block suffices.
    unit = (8 * n_var) // math.gcd(8, n_var)              # lcm(8, n_var)
    const_mask = (unit <= max(512, block_m)) and not force_streamed_mask
    if not const_mask:
        unit = 8                                          # stream per-row mask

    bm = max(unit, (block_m // unit) * unit)
    bm = min(bm, _round_up(M, unit))
    if _cdiv(M, bm) < 2 and M > unit:                     # megacore: >= 2 tiles
        bm = min(bm, _round_up(_cdiv(M, 2), unit))
    M_rows = max(M, bm)                                   # tiny pad iff bm > M
    grid_m = _cdiv(M_rows, bm)

    # --- VMEM budget / path selection -----------------------------------------
    try:
        phys = int(getattr(pltpu.get_tpu_info(), "vmem_capacity_bytes",
                           64 << 20))
    except Exception:                                     # pragma: no cover
        phys = 64 << 20                                   # conservative (v7x)
    vmem_cap = int(phys * 0.85)                           # compiler headroom

    def fused_bytes(bm_):
        b = 2 * L * two_fp * csize                        # A + S (Buffered(1))
        b += (1 if const_mask else 2) * bm_ * two_fp * 4  # mask block(s)
        b += 2 * bm_ * L * 4                              # x (double-buffered)
        b += 2 * bm_ * L * (fsize + 4)                    # two outputs
        b += bm_ * two_fp * (4 + csize) + bm_ * L * (4 + csize)  # temporaries
        return b + (2 << 20)

    def ktiled_bytes(bm_, tk_):
        b = 2 * 2 * L * tk_ * csize                       # A/S chunks (2-buf)
        b += 2 * bm_ * tk_ * 4                            # mask chunk
        b += 2 * bm_ * L * 4                              # x
        b += 2 * bm_ * L * (fsize + 4)                    # outputs
        b += bm_ * L * 4                                  # f32 accumulator
        b += bm_ * tk_ * (4 + csize) + bm_ * L * (4 + csize)
        return b + (2 << 20)

    if force_num_k_tiles is not None:
        nk = int(force_num_k_tiles)
        tk = two_fp // nk
        if nk * tk != two_fp or tk % 128:
            raise ValueError("force_num_k_tiles must split 2*Fp into "
                             "128-aligned tiles")
    else:
        nk, tk = 1, two_fp
        if fused_bytes(bm) > vmem_cap:
            # Long seq_len / small VMEM (v7x): stream A/S over a reduction axis.
            while tk > 128 and ktiled_bytes(bm, tk) > vmem_cap:
                nt = tk // 2
                if nt % 128 or two_fp % nt:
                    nt = 128
                tk = nt
            nk = two_fp // tk
    use_ktiled = nk > 1

    need = ktiled_bytes(bm, tk) if use_ktiled else fused_bytes(bm)
    vmem_limit = int(min(max(need, 32 << 20), vmem_cap))

    # --- constants --------------------------------------------------------------
    A, S = _build_fused_dft(L, Fp, compute_dtype)         # (L,2Fp), (2Fp,L)

    mask_p = jnp.pad(mask, ((0, 0), (0, Fp - F)))         # (n_var, Fp)
    mask2 = jnp.concatenate([mask_p, mask_p], axis=1)     # (n_var, 2Fp)
    if const_mask:
        mask_arr = jnp.tile(mask2, (bm // n_var, 1))      # (bm, 2Fp), constant
    else:
        mask_arr = jnp.tile(mask2, (B, 1))                # (M, 2Fp), streamed
        if M_rows > M:
            mask_arr = jnp.pad(mask_arr, ((0, M_rows - M), (0, 0)))

    # --- glue: fold (B, L, n_var) -> (B*n_var, L) -------------------------------
    # TODO(synk): if the downstream consumer accepts (B, n_var, L) layout these
    # transposes (and the output ones below) can be dropped entirely.
    x_perm = jnp.transpose(x, (0, 2, 1)).astype(jnp.float32).reshape(M, L)
    if M_rows > M:
        x_perm = jnp.pad(x_perm, ((0, M_rows - M), (0, 0)))

    out_shape = (jax.ShapeDtypeStruct((M_rows, L), filt_dtype),
                 jax.ShapeDtypeStruct((M_rows, L), out_dtype))

    if not use_ktiled:
        mask_spec = (pl.BlockSpec((bm, two_fp), lambda i: (0, 0),
                                  pipeline_mode=pl.Buffered(1))
                     if const_mask else
                     pl.BlockSpec((bm, two_fp), lambda i: (i, 0)))
        filt2, nonstat2 = pl.pallas_call(
            _fgd_kernel_fused,
            out_shape=out_shape,
            grid_spec=pltpu.PrefetchScalarGridSpec(
                num_scalar_prefetch=0,
                grid=(grid_m,),
                in_specs=[
                    pl.BlockSpec((bm, L), lambda i: (i, 0)),        # x rows
                    mask_spec,                                      # mask
                    pl.BlockSpec((L, two_fp), lambda i: (0, 0),     # analysis
                                 pipeline_mode=pl.Buffered(1)),
                    pl.BlockSpec((two_fp, L), lambda i: (0, 0),     # synthesis
                                 pipeline_mode=pl.Buffered(1)),
                ],
                out_specs=[
                    pl.BlockSpec((bm, L), lambda i: (i, 0)),
                    pl.BlockSpec((bm, L), lambda i: (i, 0)),
                ],
            ),
            compiler_params=pltpu.CompilerParams(
                dimension_semantics=("parallel",),
                vmem_limit_bytes=vmem_limit),
        )(x_perm, mask_arr, A, S)
    else:
        mask_spec = (pl.BlockSpec((bm, tk), lambda i, k: (0, k))
                     if const_mask else
                     pl.BlockSpec((bm, tk), lambda i, k: (i, k)))
        filt2, nonstat2 = pl.pallas_call(
            _fgd_kernel_ktiled,
            out_shape=out_shape,
            grid_spec=pltpu.PrefetchScalarGridSpec(
                num_scalar_prefetch=0,
                grid=(grid_m, nk),
                in_specs=[
                    pl.BlockSpec((bm, L), lambda i, k: (i, 0)),     # x rows
                    mask_spec,                                      # mask slice
                    pl.BlockSpec((L, tk), lambda i, k: (0, k)),     # A chunk
                    pl.BlockSpec((tk, L), lambda i, k: (k, 0)),     # S chunk
                ],
                out_specs=[
                    pl.BlockSpec((bm, L), lambda i, k: (i, 0)),
                    pl.BlockSpec((bm, L), lambda i, k: (i, 0)),
                ],
                scratch_shapes=[pltpu.VMEM((bm, L), jnp.float32)],
            ),
            compiler_params=pltpu.CompilerParams(
                dimension_semantics=("parallel", "arbitrary"),
                vmem_limit_bytes=vmem_limit),
        )(x_perm, mask_arr, A, S)

    # --- glue: unfold, permute back to (B, seq_len, n_var) ----------------------
    x_filtered = jnp.transpose(filt2[:M].reshape(B, n_var, L), (0, 2, 1))
    nonstationary = jnp.transpose(nonstat2[:M].reshape(B, n_var, L), (0, 2, 1))
    return x_filtered, nonstationary


# ----------------------------------------------------------------------------
# Pure-JAX reference (mirrors the PyTorch forward) for sanity checking.
# ----------------------------------------------------------------------------
def _reference(x, freq_weights, top_k):
    L = x.shape[1]
    F = L // 2 + 1
    x_perm = jnp.transpose(x, (0, 2, 1))
    xf = jnp.fft.rfft(x_perm, axis=-1)
    w = jax.nn.sigmoid(freq_weights)
    tv, ti = jax.lax.top_k(w, top_k)
    onehot = jax.nn.one_hot(ti, F, dtype=w.dtype)
    mask = jnp.sum(onehot * tv[..., None], axis=-2)
    xf_filtered = xf * mask
    x_filtered = jnp.fft.irfft(xf_filtered, n=L, axis=-1)
    x_filtered = jnp.transpose(x_filtered, (0, 2, 1))
    return x_filtered, x - x_filtered


if __name__ == "__main__":
    # Small shapes consistent with the module: seq_len=32 -> F=17 >= top_k=10.
    B, seq_len, n_var, top_k = 2, 32, 4, 10
    F = seq_len // 2 + 1

    key = jax.random.PRNGKey(0)
    k_x, k_w = jax.random.split(key)
    x = jax.random.normal(k_x, (B, seq_len, n_var), dtype=jnp.float32)
    freq_weights = jax.random.normal(k_w, (1, n_var, F), dtype=jnp.float32)

    ref_filt, ref_nonstat = _reference(x, freq_weights, top_k)

    # 1) Full-precision fused path: tight tolerance.
    filt, nonstat = frequency_guided_decomposition(
        x, freq_weights, top_k, compute_dtype=jnp.float32)
    jax.block_until_ready(filt); jax.block_until_ready(nonstat)
    np.testing.assert_allclose(np.asarray(filt), np.asarray(ref_filt),
                               rtol=1e-4, atol=1e-4)
    np.testing.assert_allclose(np.asarray(nonstat), np.asarray(ref_nonstat),
                               rtol=1e-4, atol=1e-4)

    # 2) bf16 MXU path (default on v6e/v7x): looser tolerance.
    filt_bf, nonstat_bf = frequency_guided_decomposition(
        x, freq_weights, top_k, compute_dtype=jnp.bfloat16)
    jax.block_until_ready(filt_bf); jax.block_until_ready(nonstat_bf)
    np.testing.assert_allclose(np.asarray(filt_bf), np.asarray(ref_filt),
                               rtol=5e-2, atol=8e-2)
    np.testing.assert_allclose(np.asarray(nonstat_bf), np.asarray(ref_nonstat),
                               rtol=5e-2, atol=8e-2)

    # 3) Frequency-axis (contraction) tiled path, f32: tight tolerance.
    filt_kt, nonstat_kt = frequency_guided_decomposition(
        x, freq_weights, top_k, compute_dtype=jnp.float32, force_num_k_tiles=2)
    jax.block_until_ready(filt_kt); jax.block_until_ready(nonstat_kt)
    np.testing.assert_allclose(np.asarray(filt_kt), np.asarray(ref_filt),
                               rtol=1e-4, atol=1e-4)
    np.testing.assert_allclose(np.asarray(nonstat_kt), np.asarray(ref_nonstat),
                               rtol=1e-4, atol=1e-4)

    # 4) Streamed per-row mask fallback (large/odd n_var path), f32.
    filt_sm, nonstat_sm = frequency_guided_decomposition(
        x, freq_weights, top_k, compute_dtype=jnp.float32,
        force_streamed_mask=True)
    jax.block_until_ready(filt_sm); jax.block_until_ready(nonstat_sm)
    np.testing.assert_allclose(np.asarray(filt_sm), np.asarray(ref_filt),
                               rtol=1e-4, atol=1e-4)
    np.testing.assert_allclose(np.asarray(nonstat_sm), np.asarray(ref_nonstat),
                               rtol=1e-4, atol=1e-4)

    print("KERNEL_OK")
</pallas_src>

<mosaic_0001>
module attributes {stable_mosaic.version = 11 : i64} {
  func.func @_fgd_kernel_fused(%arg0: i32, %arg1: memref<8x32xf32, #tpu.memory_space<vmem>>, %arg2: memref<8x256xf32, #tpu.memory_space<vmem>>, %arg3: memref<32x256xf32, #tpu.memory_space<vmem>>, %arg4: memref<256x32xf32, #tpu.memory_space<vmem>>, %arg5: memref<8x32xf32, #tpu.memory_space<vmem>>, %arg6: memref<8x32xf32, #tpu.memory_space<vmem>>) attributes {dimension_semantics = [#tpu.dimension_semantics<parallel>], iteration_bounds = array<i64: 1>, scalar_prefetch = 0 : i64, scratch_operands = 0 : i64, tpu.core_type = #tpu.core_type<tc>, window_params = [{transform_indices = @transform_0, window_bounds = array<i64: 8, 32>}, {pipeline_mode = #tpu.pipeline_mode<synchronous>, transform_indices = @transform_1, window_bounds = array<i64: 8, 256>}, {pipeline_mode = #tpu.pipeline_mode<synchronous>, transform_indices = @transform_2, window_bounds = array<i64: 32, 256>}, {pipeline_mode = #tpu.pipeline_mode<synchronous>, transform_indices = @transform_3, window_bounds = array<i64: 256, 32>}, {transform_indices = @transform_4, window_bounds = array<i64: 8, 32>}, {transform_indices = @transform_5, window_bounds = array<i64: 8, 32>}]} {
    %c0 = arith.constant 0 : index
    %c0_0 = arith.constant 0 : index
    %0 = vector.load %arg1[%c0, %c0_0] : memref<8x32xf32, #tpu.memory_space<vmem>>, vector<8x32xf32>
    %c0_1 = arith.constant 0 : index
    %c0_2 = arith.constant 0 : index
    %1 = vector.load %arg3[%c0_1, %c0_2] : memref<32x256xf32, #tpu.memory_space<vmem>>, vector<32x256xf32>
    %cst = arith.constant dense<0.000000e+00> : vector<8x256xf32>
    %2 = tpu.matmul %0, %1, %cst {dimension_numbers = #tpu.dot_dimension_numbers<[1], [0], [0], [1], [0, 0, 1, 1], [], []>} : vector<8x32xf32>, vector<32x256xf32>, vector<8x256xf32> -> vector<8x256xf32>
    %c0_3 = arith.constant 0 : index
    %c0_4 = arith.constant 0 : index
    %3 = vector.load %arg2[%c0_3, %c0_4] : memref<8x256xf32, #tpu.memory_space<vmem>>, vector<8x256xf32>
    %4 = arith.mulf %2, %3 : vector<8x256xf32>
    %c0_5 = arith.constant 0 : index
    %c0_6 = arith.constant 0 : index
    %5 = vector.load %arg4[%c0_5, %c0_6] : memref<256x32xf32, #tpu.memory_space<vmem>>, vector<256x32xf32>
    %cst_7 = arith.constant dense<0.000000e+00> : vector<8x32xf32>
    %6 = tpu.matmul %4, %5, %cst_7 {dimension_numbers = #tpu.dot_dimension_numbers<[1], [0], [0], [1], [0, 0, 1, 1], [], []>} : vector<8x256xf32>, vector<256x32xf32>, vector<8x32xf32> -> vector<8x32xf32>
    %c0_8 = arith.constant 0 : index
    %c0_9 = arith.constant 0 : index
    %7 = vector.load %arg5[%c0_8, %c0_9] : memref<8x32xf32, #tpu.memory_space<vmem>>, vector<8x32xf32>
    tpu.vector_store %arg5[%c0_8, %c0_9], %6 {strides = array<i32>} : memref<8x32xf32, #tpu.memory_space<vmem>>, vector<8x32xf32>,
    %8 = arith.subf %0, %6 : vector<8x32xf32>
    %c0_10 = arith.constant 0 : index
    %c0_11 = arith.constant 0 : index
    %9 = vector.load %arg6[%c0_10, %c0_11] : memref<8x32xf32, #tpu.memory_space<vmem>>, vector<8x32xf32>
    tpu.vector_store %arg6[%c0_10, %c0_11], %8 {strides = array<i32>} : memref<8x32xf32, #tpu.memory_space<vmem>>, vector<8x32xf32>,
    return
  }
  func.func @transform_0(%arg0: i32) -> (i32, i32) {
    %c0_i32 = arith.constant 0 : i32
    %c0_i32_0 = arith.constant 0 : i32
    return %arg0, %c0_i32 : i32, i32
  }
  func.func @transform_1(%arg0: i32) -> (i32, i32) {
    %c0_i32 = arith.constant 0 : i32
    %c0_i32_0 = arith.constant 0 : i32
    %c0_i32_1 = arith.constant 0 : i32
    return %c0_i32, %c0_i32_0 : i32, i32
  }
  func.func @transform_2(%arg0: i32) -> (i32, i32) {
    %c0_i32 = arith.constant 0 : i32
    %c0_i32_0 = arith.constant 0 : i32
    %c0_i32_1 = arith.constant 0 : i32
    return %c0_i32, %c0_i32_0 : i32, i32
  }
  func.func @transform_3(%arg0: i32) -> (i32, i32) {
    %c0_i32 = arith.constant 0 : i32
    %c0_i32_0 = arith.constant 0 : i32
    %c0_i32_1 = arith.constant 0 : i32
    return %c0_i32, %c0_i32_0 : i32, i32
  }
  func.func @transform_4(%arg0: i32) -> (i32, i32) {
    %c0_i32 = arith.constant 0 : i32
    %c0_i32_0 = arith.constant 0 : i32
    return %arg0, %c0_i32 : i32, i32
  }
  func.func @transform_5(%arg0: i32) -> (i32, i32) {
    %c0_i32 = arith.constant 0 : i32
    %c0_i32_0 = arith.constant 0 : i32
    return %arg0, %c0_i32 : i32, i32
  }
}

</mosaic_0001>

<llo_original>
// kernel: tpu_custom_call.1
$region0: #{tpu_custom_call.1}
  #allocation0 [shape = 'u32[]', space=smem, size = 0x4, offset = 0x4, fixed_abs, tag = 'smem constant byte address 0x4 - core index']
  #allocation1 [shape = 'u32[144,128]{1,0:T(1,128)}', space=vmem, size = 0x12000, scoped, tag = 'internal scratch']
  %s0 = inlined_call_operand.vmem [shape: f32[8,32], index: 0, kind: input, shape index: {}]
  %s1 = inlined_call_operand.vmem [shape: f32[8,256], index: 1, kind: input, shape index: {}]
  %s2 = inlined_call_operand.vmem [shape: f32[32,256], index: 2, kind: input, shape index: {}]
  %s3 = inlined_call_operand.vmem [shape: f32[256,32], index: 3, kind: input, shape index: {}]
  %s4 = inlined_call_operand.hbm [shape: f32[8,32], index: 4, kind: output, shape index: {0}]
  %s5 = inlined_call_operand.hbm [shape: f32[8,32], index: 5, kind: output, shape index: {1}]
  %6 = xla_tuple %s4, %s5
  %s7 = sld [smem:[#allocation0]]
  $region34: #{tpu_custom_call.1} parent=0
    _
  %s9 = ssub.s32 1, %s7
  %s10 = scalar_select 0, %s9, %s7
  $region1: #{tpu_custom_call.1} parent=0
    #allocation2 [shape = 'u8[4096]{0}', space=vmem, size = 0x1000, scoped, tag = 'output window, operand 0, single buffered']
    #allocation3 [shape = 's32[1]{0}', space=sflag, size = 0x4, scoped, tag = 'scoped memory for tpu_custom_call.1']
    #allocation4 [shape = 'u8[4096]{0}', space=vmem, size = 0x1000, scoped, tag = 'output window, operand 1, single buffered']
    #allocation5 [shape = 's32[1]{0}', space=sflag, size = 0x4, scoped, tag = 'scoped memory for tpu_custom_call.1']
    %11 = vsyncpa [#allocation3], 0
    %12 = vsyncpa [#allocation5], 0
    // Predicated region
    $region2: #{tpu_custom_call.1} parent=1 // pred_check
      _
    $region3: #{tpu_custom_call.1} parent=1 // pred_check_branch
      %14 = sbr.rel (0) target = $region5
    $region4: #{tpu_custom_call.1} parent=1 // pred_region
      _
    $region5: #{tpu_custom_call.1} parent=1 // pred_fallthru
      _
    // Predicated region
    $region6: #{tpu_custom_call.1} parent=1 // pred_check
      _
    $region7: #{tpu_custom_call.1} parent=1 // pred_check_branch
      %16 = sbr.rel (0) target = $region9
    $region8: #{tpu_custom_call.1} parent=1 // pred_region
      _
    $region9: #{tpu_custom_call.1} parent=1 // pred_fallthru
      _
    // Predicated region
    $region10: #{tpu_custom_call.1} parent=1 // pred_check
      _
    $region11: #{tpu_custom_call.1} parent=1 // pred_check_branch
      %18 = sbr.rel (0) target = $region13
    $region12: #{tpu_custom_call.1} parent=1 // pred_region
      _
    $region13: #{tpu_custom_call.1} parent=1 // pred_fallthru
      _
    // Predicated region
    $region14: #{tpu_custom_call.1} parent=1 // pred_check
      _
    $region15: #{tpu_custom_call.1} parent=1 // pred_check_branch
      %20 = sbr.rel (0) target = $region17
    $region16: #{tpu_custom_call.1} parent=1 // pred_region
      _
    $region17: #{tpu_custom_call.1} parent=1 // pred_fallthru
      _
    %v21 = vld [vmem:[%s0] sm:$0xff]
    %v22 = vld [vmem:[%s2] sm:$0xff]
    %v23 = vld [vmem:[%s2 + $0x8] sm:$0xff]
    %v24 = vld [vmem:[%s2 + $0x10] sm:$0xff]
    %v25 = vld [vmem:[%s2 + $0x18] sm:$0xff]
    %v26 = vld [vmem:[%s2 + $0x20] sm:$0xff]
    %v27 = vld [vmem:[%s2 + $0x28] sm:$0xff]
    %v28 = vld [vmem:[%s2 + $0x30] sm:$0xff]
    %v29 = vld [vmem:[%s2 + $0x38] sm:$0xff]
    %vm30 = vcmask 261120
    %v32 = vsel %vm30, %v21, 0
    %34 = vmatprep.subr.mxu0 %v23
    %35 = vmatpush1.msra.mxu0 %v22
    %36 = vmatprep.subr.mxu0 %v25
    %37 = vmatpush1.msra.mxu0 %v24
    %38 = vmatprep.subr.mxu0 %v27
    %39 = vmatpush1.msra.mxu0 %v26
    %40 = vmatprep.subr.mxu0 %v29
    %41 = vmatpush1.msra.mxu0 %v28
    %42 = vmatprep.subr.mxu0 0.0
    %43 = vmatpush1.msra.mxu0 0.0
    %44 = vmatprep.subr.mxu0 0.0
    %45 = vmatpush1.msra.mxu0 0.0
    %46 = vmatprep.subr.mxu0 0.0
    %47 = vmatpush1.msra.mxu0 0.0
    %48 = vmatprep.subr.mxu0 0.0
    %49 = vmatpush1.msra.mxu0 0.0
    %50 = vmatprep.subr.mxu0 0.0
    %51 = vmatpush1.msra.mxu0 0.0
    %52 = vmatprep.subr.mxu0 0.0
    %53 = vmatpush1.msra.mxu0 0.0
    %54 = vmatprep.subr.mxu0 0.0
    %55 = vmatpush1.msra.mxu0 0.0
    %56 = vmatprep.subr.mxu0 0.0
    %57 = vmatpush1.msra.mxu0 0.0
    %58 = vmatprep.subr.mxu0 0.0
    %59 = vmatpush1.msra.mxu0 0.0
    %60 = vmatprep.subr.mxu0 0.0
    %61 = vmatpush1.msra.mxu0 0.0
    %62 = vmatprep.subr.mxu0 0.0
    %63 = vmatpush1.msra.mxu0 0.0
    %64 = vmatprep.subr.mxu0 0.0
    %65 = vmatpush1.msra.mxu0 0.0
    %66 = vmatprep.subr.mxu0 0.0
    %67 = vmatpush1.msra.mxu0 0.0
    %68 = vmatprep.subr.mxu0 0.0
    %69 = vmatpush1.msra.mxu0 0.0
    %70 = vmatprep.subr.mxu0 0.0
    %71 = vmatpush1.msra.mxu0 0.0
    %72 = vmatprep.subr.mxu0 0.0
    %73 = vmatpush1.msra.mxu0 0.0
    %74 = vmatprep.subr.mxu0 0.0
    %75 = vmatpush1.msra.mxu0 0.0
    %76 = vmatprep.subr.mxu0 0.0
    %77 = vmatpush1.msra.mxu0 0.0
    %78 = vmatprep.subr.mxu0 0.0
    %79 = vmatpush1.msra.mxu0 0.0
    %80 = vmatprep.subr.mxu0 0.0
    %81 = vmatpush1.msra.mxu0 0.0
    %82 = vmatprep.subr.mxu0 0.0
    %83 = vmatpush1.msra.mxu0 0.0
    %84 = vmatprep.subr.mxu0 0.0
    %85 = vmatpush1.msra.mxu0 0.0
    %86 = vmatprep.subr.mxu0 0.0
    %87 = vmatpush1.msra.mxu0 0.0
    %88 = vmatprep.subr.mxu0 0.0
    %89 = vmatpush1.msra.mxu0 0.0
    %90 = vmatprep.subr.mxu0 0.0
    %91 = vmatpush1.msra.mxu0 0.0
    %92 = vmatprep.subr.mxu0 0.0
    %93 = vmatpush1.msra.mxu0 0.0
    %94 = vmatprep.subr.mxu0 0.0
    %95 = vmatpush1.msra.mxu0 0.0
    %96 = vmatprep.subr.mxu0 0.0
    %97 = vmatpush1.msra.mxu0 0.0
    %98 = vmatprep.mubr.f32.mxu0 0.0
    %99 = vmatmul.mubr.f32.gmra.mrb[0].mxu0 %v32
    %v100 = vpop.f32.mrb[0].mxu0
    %v101 = vadd.f32 0.0, %v100
    %v102 = vpop.f32.mrb[0].mxu0
    %v103 = vadd.f32 0.0, %v102
    %104 = vdwg.mxu0
    %v105 = vld [vmem:[%s1] sm:$0xff]
    %v106 = vld [vmem:[%s1 + $0x8] sm:$0xff]
    %v107 = vmul.f32 %v101, %v105
    %v108 = vmul.f32 %v103, %v106
    %v109 = vld [vmem:[%s3] sm:$0xff]
    %v110 = vld [vmem:[%s3 + $0x8] sm:$0xff]
    %v111 = vld [vmem:[%s3 + $0x10] sm:$0xff]
    %v112 = vld [vmem:[%s3 + $0x18] sm:$0xff]
    %v113 = vld [vmem:[%s3 + $0x20] sm:$0xff]
    %v114 = vld [vmem:[%s3 + $0x28] sm:$0xff]
    %v115 = vld [vmem:[%s3 + $0x30] sm:$0xff]
    %v116 = vld [vmem:[%s3 + $0x38] sm:$0xff]
    %v117 = vld [vmem:[%s3 + $0x40] sm:$0xff]
    %v118 = vld [vmem:[%s3 + $0x48] sm:$0xff]
    %v119 = vld [vmem:[%s3 + $0x50] sm:$0xff]
    %v120 = vld [vmem:[%s3 + $0x58] sm:$0xff]
    %v121 = vld [vmem:[%s3 + $0x60] sm:$0xff]
    %v122 = vld [vmem:[%s3 + $0x68] sm:$0xff]
    %v123 = vld [vmem:[%s3 + $0x70] sm:$0xff]
    %v124 = vld [vmem:[%s3 + $0x78] sm:$0xff]
    %v125 = vld [vmem:[%s3 + $0x80] sm:$0xff]
    %v126 = vld [vmem:[%s3 + $0x88] sm:$0xff]
    %v127 = vld [vmem:[%s3 + $0x90] sm:$0xff]
    %v128 = vld [vmem:[%s3 + $0x98] sm:$0xff]
    %v129 = vld [vmem:[%s3 + $0xa0] sm:$0xff]
    %v130 = vld [vmem:[%s3 + $0xa8] sm:$0xff]
    %v131 = vld [vmem:[%s3 + $0xb0] sm:$0xff]
    %v132 = vld [vmem:[%s3 + $0xb8] sm:$0xff]
    %v133 = vld [vmem:[%s3 + $0xc0] sm:$0xff]
    %v134 = vld [vmem:[%s3 + $0xc8] sm:$0xff]
    %v135 = vld [vmem:[%s3 + $0xd0] sm:$0xff]
    %v136 = vld [vmem:[%s3 + $0xd8] sm:$0xff]
    %v137 = vld [vmem:[%s3 + $0xe0] sm:$0xff]
    %v138 = vld [vmem:[%s3 + $0xe8] sm:$0xff]
    %v139 = vld [vmem:[%s3 + $0xf0] sm:$0xff]
    %v140 = vld [vmem:[%s3 + $0xf8] sm:$0xff]
    %141 = vmatprep.subr.mxu0 0.0
    %142 = vmatpush1.msra.mxu0 %v109
    %143 = vmatprep.subr.mxu0 0.0
    %144 = vmatpush1.msra.mxu0 %v110
    %145 = vmatprep.subr.mxu0 0.0
    %146 = vmatpush1.msra.mxu0 %v111
    %147 = vmatprep.subr.mxu0 0.0
    %148 = vmatpush1.msra.mxu0 %v112
    %149 = vmatprep.subr.mxu0 0.0
    %150 = vmatpush1.msra.mxu0 %v113
    %151 = vmatprep.subr.mxu0 0.0
    %152 = vmatpush1.msra.mxu0 %v114
    %153 = vmatprep.subr.mxu0 0.0
    %154 = vmatpush1.msra.mxu0 %v115
    %155 = vmatprep.subr.mxu0 0.0
    %156 = vmatpush1.msra.mxu0 %v116
    %157 = vmatprep.subr.mxu0 0.0
    %158 = vmatpush1.msra.mxu0 %v117
    %159 = vmatprep.subr.mxu0 0.0
    %160 = vmatpush1.msra.mxu0 %v118
    %161 = vmatprep.subr.mxu0 0.0
    %162 = vmatpush1.msra.mxu0 %v119
    %163 = vmatprep.subr.mxu0 0.0
    %164 = vmatpush1.msra.mxu0 %v120
    %165 = vmatprep.subr.mxu0 0.0
    %166 = vmatpush1.msra.mxu0 %v121
    %167 = vmatprep.subr.mxu0 0.0
    %168 = vmatpush1.msra.mxu0 %v122
    %169 = vmatprep.subr.mxu0 0.0
    %170 = vmatpush1.msra.mxu0 %v123
    %171 = vmatprep.subr.mxu0 0.0
    %172 = vmatpush1.msra.mxu0 %v124
    %173 = vmatprep.subr.mxu0 0.0
    %174 = vmatpush1.msra.mxu0 %v125
    %175 = vmatprep.subr.mxu0 0.0
    %176 = vmatpush1.msra.mxu0 %v126
    %177 = vmatprep.subr.mxu0 0.0
    %178 = vmatpush1.msra.mxu0 %v127
    %179 = vmatprep.subr.mxu0 0.0
    %180 = vmatpush1.msra.mxu0 %v128
    %181 = vmatprep.subr.mxu0 0.0
    %182 = vmatpush1.msra.mxu0 %v129
    %183 = vmatprep.subr.mxu0 0.0
    %184 = vmatpush1.msra.mxu0 %v130
    %185 = vmatprep.subr.mxu0 0.0
    %186 = vmatpush1.msra.mxu0 %v131
    %187 = vmatprep.subr.mxu0 0.0
    %188 = vmatpush1.msra.mxu0 %v132
    %189 = vmatprep.subr.mxu0 0.0
    %190 = vmatpush1.msra.mxu0 %v133
    %191 = vmatprep.subr.mxu0 0.0
    %192 = vmatpush1.msra.mxu0 %v134
    %193 = vmatprep.subr.mxu0 0.0
    %194 = vmatpush1.msra.mxu0 %v135
    %195 = vmatprep.subr.mxu0 0.0
    %196 = vmatpush1.msra.mxu0 %v136
    %197 = vmatprep.subr.mxu0 0.0
    %198 = vmatpush1.msra.mxu0 %v137
    %199 = vmatprep.subr.mxu0 0.0
    %200 = vmatpush1.msra.mxu0 %v138
    %201 = vmatprep.subr.mxu0 0.0
    %202 = vmatpush1.msra.mxu0 %v139
    %203 = vmatprep.subr.mxu0 0.0
    %204 = vmatpush1.msra.mxu0 %v140
    %205 = vmatprep.mubr.f32.mxu0 %v108
    %206 = vmatmul.mubr.f32.gmra.mrb[0].mxu0 %v107
    %v207 = vpop.f32.mrb[0].mxu0
    %v208 = vadd.f32 0.0, %v207
    %v209 = vpop.f32.mrb[0].mxu0
    %210 = vdwg.mxu0
    %211 = vst.msk [vmem:[#allocation2] sm:$0xff] %vm30, %v208
    %v212 = vsub.f32 %v21, %v208
    %213 = vst.msk [vmem:[#allocation4] sm:$0xff] %vm30, %v212
    // Predicated region
    $region18: #{tpu_custom_call.1} parent=1 // pred_check
      _
    $region19: #{tpu_custom_call.1} parent=1 // pred_check_branch
      %215 = sbr.rel (0) target = $region21
    $region20: #{tpu_custom_call.1} parent=1 // pred_region
      %s217 = ssub.s32 128, 128
      %218 = vsyncadd [#allocation3], %s217
      %s220 = sshll.u32 [#allocation2], 4
      %s221 = int_to_ptr.vmem [resolvable:$true] %s220
      %223 = dma.vmem_to_hbm [thread:$0]  %s221, 128, %s4, [#allocation3]
    $region21: #{tpu_custom_call.1} parent=1 // pred_fallthru
      _
    // Predicated region
    $region22: #{tpu_custom_call.1} parent=1 // pred_check
      _
    $region23: #{tpu_custom_call.1} parent=1 // pred_check_branch
      %225 = sbr.rel (0) target = $region25
    $region24: #{tpu_custom_call.1} parent=1 // pred_region
      %s227 = ssub.s32 128, 128
      %228 = vsyncadd [#allocation5], %s227
      %s230 = sshll.u32 [#allocation4], 4
      %s231 = int_to_ptr.vmem [resolvable:$true] %s230
      %233 = dma.vmem_to_hbm [thread:$0]  %s231, 128, %s5, [#allocation5]
    $region25: #{tpu_custom_call.1} parent=1 // pred_fallthru
      _
    // Predicated region
    $region26: #{tpu_custom_call.1} parent=1 // pred_check
      _
    $region27: #{tpu_custom_call.1} parent=1 // pred_check_branch
      %235 = sbr.rel (0) target = $region29
    $region28: #{tpu_custom_call.1} parent=1 // pred_region
      %236 = dma.done [#allocation3], 128
    $region29: #{tpu_custom_call.1} parent=1 // pred_fallthru
      _
    // Predicated region
    $region30: #{tpu_custom_call.1} parent=1 // pred_check
      _
    $region31: #{tpu_custom_call.1} parent=1 // pred_check_branch
      %238 = sbr.rel (0) target = $region33
    $region32: #{tpu_custom_call.1} parent=1 // pred_region
      %239 = dma.done [#allocation5], 128
    $region33: #{tpu_custom_call.1} parent=1 // pred_fallthru
      _
    %240 = vsyncpa [#allocation3], 1
    %241 = vsyncpa [#allocation5], 1

</llo_original>
